<compile_context>
chip_gen: v7x
topology: tpu7x:2x2x1
jax: 0.10.0
libtpu: 0.0.40
codegen_flags: <defaults>
</compile_context>

<pallas_src>
import functools

import jax
import jax.numpy as jnp
import numpy as np
from jax.experimental import pallas as pl
from jax.experimental.pallas import tpu as pltpu

MAX_LEN = 128        # lane-aligned encoded-label length (UTF-8 bytes)
TQ = 256             # query rows per grid step (lane-dense output row)
V_TILE = 128         # vocab rows rounded up to the lane tile of the score mat
NOT_FOUND = -1       # TODO(synk): original handles OOV via Vocabulary; callers
                     # of this port must handle label_ids == -1 explicitly.
_SENTINEL = 2 ** 30

# Exactness bound for the bf16-MXU / f32-accumulate squared-distance trick:
# every intermediate (2 * sum_L 255^2) must stay below 2^24 so f32 is lossless.
assert 2 * MAX_LEN * 255 * 255 < 2 ** 24, "MAX_LEN too large for exact f32 gram"


def _round_up(x: int, m: int) -> int:
    return ((x + m - 1) // m) * m


def _encode_bytes(label: str, max_len: int = MAX_LEN) -> np.ndarray:
    # TODO(synk): labels longer than 128 UTF-8 bytes are truncated before the
    # compare, so two labels sharing their first 128 bytes would collide.
    b = label.encode("utf-8")[:max_len]
    row = np.zeros((max_len,), dtype=np.uint8)
    if b:
        row[: len(b)] = np.frombuffer(b, dtype=np.uint8)
    return row


def _lookup_kernel(q_ref, vocab_ref, vnorm_ref, out_ref, *, num_valid: int):
    """q_ref: (TQ, L) u8, vocab_ref: (V, L) bf16, vnorm_ref: (V, 1) f32,
    out_ref: (8, TQ) i32 (all 8 sublanes carry the same index row)."""
    qf32 = q_ref[...].astype(jnp.float32)                    # (TQ, L) exact
    qbf = qf32.astype(jnp.bfloat16)                           # exact for bytes

    # MXU: cross-gram with queries on the LANE axis of the result.
    g = jax.lax.dot_general(
        vocab_ref[...], qbf,
        dimension_numbers=(((1,), (1,)), ((), ())),
        preferred_element_type=jnp.float32)                   # (V, TQ) exact

    # ||q||^2 as a lane-dense row: full-tile transpose (XLU) + sublane reduce.
    qt = jnp.transpose(qf32)                                   # (L, TQ)
    q_norm = jnp.sum(qt * qt, axis=0, keepdims=True)           # (1, TQ) exact

    # Squared distance; integer-valued and exact in f32 => == 0 iff byte-equal.
    dist = (vnorm_ref[...] - 2.0 * g) + q_norm                 # (V, TQ)

    row_ids = jax.lax.broadcasted_iota(jnp.int32, dist.shape, 0)   # (V, TQ)
    is_match = jnp.logical_and(dist < 0.5, row_ids < num_valid)
    cand = jnp.where(is_match, row_ids, jnp.int32(_SENTINEL))
    idx = jnp.min(cand, axis=0, keepdims=True)                 # (1, TQ) FIRST
    idx = jnp.where(idx >= num_valid, jnp.int32(NOT_FOUND), idx)

    # Single lane-dense unmasked store (8 sublanes keep the block tile-legal).
    out_ref[...] = jnp.broadcast_to(idx, out_ref.shape)


def _build_lookup(num_valid: int, v_pad: int, b_pad: int):
    kernel = functools.partial(_lookup_kernel, num_valid=num_valid)
    lookup = pl.pallas_call(
        kernel,
        out_shape=jax.ShapeDtypeStruct((8, b_pad), jnp.int32),
        grid_spec=pltpu.PrefetchScalarGridSpec(
            num_scalar_prefetch=0,
            grid=(b_pad // TQ,),
            in_specs=[
                # Query tile marches over the batch axis.
                pl.BlockSpec((TQ, MAX_LEN), lambda b: (b, 0)),
                # Constant index_maps: vocab + norms stay VMEM-resident.
                # TODO(synk): if v_pad*MAX_LEN ever grows toward the v7x 64 MiB
                # VMEM budget, single-buffer these (pipeline_mode=pl.Buffered(1))
                # or add an "arbitrary" vocab grid axis with a running min.
                pl.BlockSpec((v_pad, MAX_LEN), lambda b: (0, 0)),
                pl.BlockSpec((v_pad, 1), lambda b: (0, 0)),
            ],
            out_specs=pl.BlockSpec((8, TQ), lambda b: (0, b)),
        ),
        compiler_params=pltpu.CompilerParams(
            dimension_semantics=("parallel",)),
    )
    return jax.jit(lookup)


class LabelTransform:
    """JAX/Pallas port of pytext LabelTransform (batched label -> id lookup)."""

    def __init__(self, label_names):
        self.label_names = list(label_names)
        n = len(self.label_names)
        v_pad = max(V_TILE, _round_up(n, V_TILE))
        rows = np.zeros((v_pad, MAX_LEN), dtype=np.uint8)
        for i, name in enumerate(self.label_names):
            rows[i] = _encode_bytes(name)
        self.num_valid = n
        self.v_pad = v_pad
        # Encoded & uploaded once; stays on device for every lookup.
        # bf16 is exact for byte values <= 255.
        self.vocab_codes = jnp.asarray(rows).astype(jnp.bfloat16)   # (V_pad, L)
        norms = (rows.astype(np.int64) ** 2).sum(axis=1).astype(np.float32)
        self.vocab_norms = jnp.asarray(norms.reshape(v_pad, 1))     # (V_pad, 1)
        self._compiled = {}                                          # b_pad -> fn

    def _lookup_fn(self, b_pad: int):
        fn = self._compiled.get(b_pad)
        if fn is None:
            fn = _build_lookup(self.num_valid, self.v_pad, b_pad)
            self._compiled[b_pad] = fn
        return fn

    def lookup(self, labels):
        """Batched lookup: list of label strings -> (B,) int32 label ids."""
        # NOTE: for realistic batch sizes the host encode + H2D transfer
        # dominates; encoding fills one preallocated buffer in a single pass.
        b = len(labels)
        # Pad to >= 2 grid steps so the parallel axis can use both v7x cores.
        b_pad = max(2 * TQ, _round_up(b, TQ))
        q = np.zeros((b_pad, MAX_LEN), dtype=np.uint8)
        for i, lab in enumerate(labels):
            enc = lab.encode("utf-8")[:MAX_LEN]
            if enc:
                q[i, : len(enc)] = np.frombuffer(enc, dtype=np.uint8)
        ids = self._lookup_fn(b_pad)(jnp.asarray(q), self.vocab_codes,
                                     self.vocab_norms)
        return ids[0, :b]

    def __call__(self, label):
        # TODO(synk): torch.long (int64) mapped to int32 (JAX x64 disabled).
        if isinstance(label, str):
            # Original forward(label: str) -> 0-d 'label_ids' tensor.
            return {"label_ids": self.lookup([label]).reshape(())}
        # Batched extension: sequence of labels -> (B,) label ids.
        return {"label_ids": self.lookup(list(label))}


if __name__ == "__main__":
    label_names = ["negative", "neutral", "positive", "spam", "toxic",
                   "ham", "clickbait", "other"]
    transform = LabelTransform(label_names)

    # Deterministic batch of query labels with PRNGKey(0).
    key = jax.random.PRNGKey(0)
    batch = 8
    picks = [int(p) for p in jax.random.randint(key, (batch,), 0, len(label_names))]
    query_labels = [label_names[p] for p in picks]

    # Batched path: one pallas_call for the whole batch.
    out = transform(query_labels)
    label_ids = jax.block_until_ready(out["label_ids"])
    assert label_ids.shape == (batch,)
    assert label_ids.dtype == jnp.int32
    assert [int(i) for i in label_ids] == picks, (list(map(int, label_ids)), picks)

    # Single-label path (original forward(label: str) signature) -> 0-d id.
    out_one = transform(query_labels[0])
    one = jax.block_until_ready(out_one["label_ids"])
    assert one.shape == () and int(one) == picks[0]

    # OOV returns -1 (see TODO above).
    oov = jax.block_until_ready(transform("definitely-not-a-label")["label_ids"])
    assert int(oov) == NOT_FOUND

    print("KERNEL_OK")
</pallas_src>

<mosaic_0001>
module attributes {stable_mosaic.version = 11 : i64} {
  func.func @_lookup_kernel(%arg0: i32, %arg1: memref<256x128xi8, #tpu.memory_space<vmem>>, %arg2: memref<128x128xbf16, #tpu.memory_space<vmem>>, %arg3: memref<128x1xf32, #tpu.memory_space<vmem>>, %arg4: memref<8x256xi32, #tpu.memory_space<vmem>>) attributes {dimension_semantics = [#tpu.dimension_semantics<parallel>], iteration_bounds = array<i64: 2>, scalar_prefetch = 0 : i64, scratch_operands = 0 : i64, tpu.core_type = #tpu.core_type<tc>, window_params = [{transform_indices = @transform_0, window_bounds = array<i64: 256, 128>}, {pipeline_mode = #tpu.pipeline_mode<synchronous>, transform_indices = @transform_1, window_bounds = array<i64: 128, 128>}, {pipeline_mode = #tpu.pipeline_mode<synchronous>, transform_indices = @transform_2, window_bounds = array<i64: 128, 1>}, {transform_indices = @transform_3, window_bounds = array<i64: 8, 256>}]} {
    %c0 = arith.constant 0 : index
    %c0_0 = arith.constant 0 : index
    %0 = vector.load %arg1[%c0, %c0_0] : memref<256x128xi8, #tpu.memory_space<vmem>>, vector<256x128xi8>
    %1 = arith.uitofp %0 : vector<256x128xi8> to vector<256x128xf32>
    %2 = arith.truncf %1 : vector<256x128xf32> to vector<256x128xbf16>
    %c0_1 = arith.constant 0 : index
    %c0_2 = arith.constant 0 : index
    %3 = vector.load %arg2[%c0_1, %c0_2] : memref<128x128xbf16, #tpu.memory_space<vmem>>, vector<128x128xbf16>
    %cst = arith.constant dense<0.000000e+00> : vector<128x256xf32>
    %4 = tpu.matmul %3, %2, %cst {dimension_numbers = #tpu.dot_dimension_numbers<[1], [1], [0], [0], [0, 0, 1, 0], [], []>} : vector<128x128xbf16>, vector<256x128xbf16>, vector<128x256xf32> -> vector<128x256xf32>
    %5 = tpu.transpose %1, [1, 0] : vector<256x128xf32> -> vector<128x256xf32>
    %6 = arith.mulf %5, %5 : vector<128x256xf32>
    %cst_3 = arith.constant dense<0.000000e+00> : vector<256xf32>
    %7 = vector.multi_reduction <add>, %6, %cst_3 [0] : vector<128x256xf32> to vector<256xf32>
    %8 = vector.shape_cast %7 : vector<256xf32> to vector<1x256xf32>
    %c0_4 = arith.constant 0 : index
    %c0_5 = arith.constant 0 : index
    %9 = vector.load %arg3[%c0_4, %c0_5] : memref<128x1xf32, #tpu.memory_space<vmem>>, vector<128x1xf32>
    %cst_6 = arith.constant 2.000000e+00 : f32
    %10 = vector.broadcast %cst_6 : f32 to vector<128x256xf32>
    %11 = arith.mulf %10, %4 : vector<128x256xf32>
    %12 = vector.broadcast %9 : vector<128x1xf32> to vector<128x256xf32>
    %13 = arith.subf %12, %11 : vector<128x256xf32>
    %14 = vector.broadcast %8 : vector<1x256xf32> to vector<128x256xf32>
    %15 = arith.addf %13, %14 : vector<128x256xf32>
    %16 = tpu.iota {dimensions = array<i32: 0>} : vector<128x256xi32>
    %cst_7 = arith.constant 5.000000e-01 : f32
    %17 = vector.broadcast %cst_7 : f32 to vector<128x256xf32>
    %18 = arith.cmpf olt, %15, %17 : vector<128x256xf32>
    %c8_i32 = arith.constant 8 : i32
    %19 = vector.broadcast %c8_i32 : i32 to vector<128x256xi32>
    %20 = arith.cmpi slt, %16, %19 : vector<128x256xi32>
    %21 = arith.andi %18, %20 : vector<128x256xi1>
    %c1073741824_i32 = arith.constant 1073741824 : i32
    %22 = vector.broadcast %c1073741824_i32 : i32 to vector<128x256xi32>
    %23 = arith.select %21, %16, %22 : vector<128x256xi1>, vector<128x256xi32>
    %cst_8 = arith.constant dense<2147483647> : vector<256xi32>
    %24 = vector.multi_reduction <minsi>, %23, %cst_8 [0] : vector<128x256xi32> to vector<256xi32>
    %25 = vector.shape_cast %24 : vector<256xi32> to vector<1x256xi32>
    %c8_i32_9 = arith.constant 8 : i32
    %26 = vector.broadcast %c8_i32_9 : i32 to vector<1x256xi32>
    %27 = arith.cmpi sge, %25, %26 : vector<1x256xi32>
    %c-1_i32 = arith.constant -1 : i32
    %28 = vector.broadcast %c-1_i32 : i32 to vector<1x256xi32>
    %29 = arith.select %27, %28, %25 : vector<1x256xi1>, vector<1x256xi32>
    %30 = vector.shape_cast %29 : vector<1x256xi32> to vector<1x256xi32>
    %31 = vector.broadcast %30 : vector<1x256xi32> to vector<8x256xi32>
    %c0_10 = arith.constant 0 : index
    %c0_11 = arith.constant 0 : index
    %32 = vector.load %arg4[%c0_10, %c0_11] : memref<8x256xi32, #tpu.memory_space<vmem>>, vector<8x256xi32>
    tpu.vector_store %arg4[%c0_10, %c0_11], %31 {strides = array<i32>} : memref<8x256xi32, #tpu.memory_space<vmem>>, vector<8x256xi32>,
    return
  }
  func.func @transform_0(%arg0: i32) -> (i32, i32) {
    %c0_i32 = arith.constant 0 : i32
    %c0_i32_0 = arith.constant 0 : i32
    return %arg0, %c0_i32 : i32, i32
  }
  func.func @transform_1(%arg0: i32) -> (i32, i32) {
    %c0_i32 = arith.constant 0 : i32
    %c0_i32_0 = arith.constant 0 : i32
    %c0_i32_1 = arith.constant 0 : i32
    return %c0_i32, %c0_i32_0 : i32, i32
  }
  func.func @transform_2(%arg0: i32) -> (i32, i32) {
    %c0_i32 = arith.constant 0 : i32
    %c0_i32_0 = arith.constant 0 : i32
    %c0_i32_1 = arith.constant 0 : i32
    return %c0_i32, %c0_i32_0 : i32, i32
  }
  func.func @transform_3(%arg0: i32) -> (i32, i32) {
    %c0_i32 = arith.constant 0 : i32
    %c0_i32_0 = arith.constant 0 : i32
    return %c0_i32, %arg0 : i32, i32
  }
}

</mosaic_0001>

<llo_original>
// kernel: tpu_custom_call.1
$region0: #{tpu_custom_call.1}
  #allocation0 [shape = 'u32[]', space=smem, size = 0x4, offset = 0x4, fixed_abs, tag = 'smem constant byte address 0x4 - core index']
  #allocation1 [shape = 'u32[144,128]{1,0:T(1,128)}', space=vmem, size = 0x12000, scoped, tag = 'internal scratch']
  %s0 = inlined_call_operand.vmem [shape: u8[512,128], index: 0, kind: input, shape index: {}]
  %s1 = inlined_call_operand.hbm [shape: bf16[128,128], index: 1, kind: input, shape index: {}]
  %s2 = inlined_call_operand.vmem [shape: f32[128,1], index: 2, kind: input, shape index: {}]
  %s3 = inlined_call_operand.hbm [shape: s32[8,512], index: 3, kind: output, shape index: {}]
  %s4 = sld [smem:[#allocation0]]
  $region49: #{tpu_custom_call.1} parent=0
    _
  %s6 = ssub.s32 1, %s4
  %s7 = scalar_select 0, %s6, %s4
  $region1: #{tpu_custom_call.1} parent=0
    #allocation2 [shape = 'u8[32768]{0}', space=vmem, size = 0x8000, scoped, tag = 'input window, operand 1, single buffered']
    #allocation3 [shape = 's32[2]{0}', space=sflag, size = 0x8, scoped, tag = 'scoped memory for tpu_custom_call.1']
    #allocation4 [shape = 's32[2]{0}', space=sflag, size = 0x8, scoped, tag = 'scoped memory for tpu_custom_call.1']
    #allocation5 [shape = 'u8[16384]{0}', space=vmem, size = 0x4000, scoped, tag = 'output window, operand 0']
    %8 = vsyncpa [#allocation3], 0
    %9 = vsyncpa [#allocation4], 0
    %s10 = scalar_lea.sflag [#allocation4], 1
    %11 = vsyncpa %s10, 0
    loop: start=0, step=1, limit=4
    $region2: #{tpu_custom_call.1} parent=1 // loop_pre_header
      _
    $region3: #{tpu_custom_call.1} parent=1 // loop_header
      %s13 = sphi 0, %s17
      %p14 = scmp.ge.s32.totalorder %s13, 4
      %s23 = sphi 0, %s25
      %s26 = sphi 0, %s23
      %s27 = sphi 0, %s26
      %s43 = sphi 0, %s27
      %s47 = sphi 0, %s47
      %s49 = sphi 0, %s47
      %s50 = sphi 0, %s49
      %s64 = sphi 0, %s50
      %s68 = sphi 0, %s68
      %s70 = sphi 0, %s68
      %s71 = sphi 0, %s70
      %s85 = sphi 0, %s71
      %s91 = sphi 0, %s93
      %s94 = sphi 0, %s91
      %s95 = sphi 0, %s94
      %s111 = sphi 0, %s95
    $region4: #{tpu_custom_call.1} parent=1 // loop_header_branch
      %16 = sbr.rel (%p14) target = $region8
    $region5: #{tpu_custom_call.1} parent=1 // loop_body
      %s18 = ssub.s32 %s13, 1
      %s19 = ssub.s32 %s13, 2
      %s20 = sadd.s32 %s13, 1
      %s21 = ssub.s32 %s13, %s20
      %p22 = scmp.eq.s32.totalorder %s21, 0
      %s24 = sadd.s32 %s23, 1
      %s25 = scalar_select %p22, %s23, %s24
      %p28 = pneg %p22
      %p29 = scmp.eq.s32.totalorder %s13, 1
      %p30 = por %p28, %p29
      %p31 = scmp.ne.s32.totalorder %s23, %s26
      %p32 = scmp.eq.s32.totalorder %s13, 0
      %p33 = por %p31, %p32
      %p34 = scmp.ne.s32.totalorder %s23, %s26
      %p35 = scmp.eq.s32.totalorder %s18, 1
      %p36 = por %p34, %p35
      %p37 = scmp.ne.s32.totalorder %s26, %s27
      %p38 = scmp.eq.s32.totalorder %s18, 0
      %p39 = por %p37, %p38
      %p40 = scmp.ne.s32.totalorder %s26, %s27
      %p41 = scmp.eq.s32.totalorder %s19, 1
      %p42 = por %p40, %p41
      %p44 = scmp.ne.s32.totalorder %s27, %s43
      %p45 = scmp.eq.s32.totalorder %s19, 0
      %p46 = por %p44, %p45
      %s48 = sadd.s32 %s47, 1
      %p51 = scmp.eq.s32.totalorder %s13, 1
      %p52 = scmp.ne.s32.totalorder %s47, %s49
      %p53 = scmp.eq.s32.totalorder %s13, 0
      %p54 = por %p52, %p53
      %p55 = scmp.ne.s32.totalorder %s47, %s49
      %p56 = scmp.eq.s32.totalorder %s18, 1
      %p57 = por %p55, %p56
      %p58 = scmp.ne.s32.totalorder %s49, %s50
      %p59 = scmp.eq.s32.totalorder %s18, 0
      %p60 = por %p58, %p59
      %p61 = scmp.ne.s32.totalorder %s49, %s50
      %p62 = scmp.eq.s32.totalorder %s19, 1
      %p63 = por %p61, %p62
      %p65 = scmp.ne.s32.totalorder %s50, %s64
      %p66 = scmp.eq.s32.totalorder %s19, 0
      %p67 = por %p65, %p66
      %s69 = sadd.s32 %s68, 1
      %p72 = scmp.eq.s32.totalorder %s13, 1
      %p73 = scmp.ne.s32.totalorder %s68, %s70
      %p74 = scmp.eq.s32.totalorder %s13, 0
      %p75 = por %p73, %p74
      %p76 = scmp.ne.s32.totalorder %s68, %s70
      %p77 = scmp.eq.s32.totalorder %s18, 1
      %p78 = por %p76, %p77
      %p79 = scmp.ne.s32.totalorder %s70, %s71
      %p80 = scmp.eq.s32.totalorder %s18, 0
      %p81 = por %p79, %p80
      %p82 = scmp.ne.s32.totalorder %s70, %s71
      %p83 = scmp.eq.s32.totalorder %s19, 1
      %p84 = por %p82, %p83
      %p86 = scmp.ne.s32.totalorder %s71, %s85
      %p87 = scmp.eq.s32.totalorder %s19, 0
      %p88 = por %p86, %p87
      %s89 = ssub.s32 %s13, %s20
      %p90 = scmp.eq.s32.totalorder %s89, 0
      %s92 = sadd.s32 %s91, 1
      %s93 = scalar_select %p90, %s91, %s92
      %p96 = pneg %p90
      %p97 = scmp.eq.s32.totalorder %s13, 1
      %p98 = por %p96, %p97
      %p99 = scmp.ne.s32.totalorder %s91, %s94
      %p100 = scmp.eq.s32.totalorder %s13, 0
      %p101 = por %p99, %p100
      %p102 = scmp.ne.s32.totalorder %s91, %s94
      %p103 = scmp.eq.s32.totalorder %s18, 1
      %p104 = por %p102, %p103
      %p105 = scmp.ne.s32.totalorder %s94, %s95
      %p106 = scmp.eq.s32.totalorder %s18, 0
      %p107 = por %p105, %p106
      %p108 = scmp.ne.s32.totalorder %s94, %s95
      %p109 = scmp.eq.s32.totalorder %s19, 1
      %p110 = por %p108, %p109
      %p112 = scmp.ne.s32.totalorder %s95, %s111
      %p113 = scmp.eq.s32.totalorder %s19, 0
      %p114 = por %p112, %p113
      %p115 = scmp.le.s32.totalorder 1, %s13
      %p116 = scmp.lt.s32.totalorder %s13, 3
      %p117 = pnand %p115, %p116
      %p118 = pneg %p117
      // Predicated region
      $region9: #{tpu_custom_call.1} parent=5 // pred_check
        _
      $region10: #{tpu_custom_call.1} parent=5 // pred_check_branch
        %120 = sbr.rel (%p117) target = $region12
      $region11: #{tpu_custom_call.1} parent=5 // pred_region
        %s121 = ssub.s32 %s13, 1
        // Predicated region
        $region13: #{tpu_custom_call.1} parent=11 // pred_check
          %p122 = pneg %p60
        $region14: #{tpu_custom_call.1} parent=11 // pred_check_branch
          %124 = sbr.rel (%p122) target = $region16
        $region15: #{tpu_custom_call.1} parent=11 // pred_region
          %s126 = ssub.s32 1024, 1024
          %127 = vsyncadd [#allocation3], %s126
          %s128 = sshll.u32 [#allocation2], 4
          %s129 = int_to_ptr.vmem [resolvable:$true] %s128
          %134 = dma.hbm_to_vmem [thread:$0]  %s1, 1024, %s129, [#allocation3], 64, 64, 4
        $region16: #{tpu_custom_call.1} parent=11 // pred_fallthru
          _
        // Predicated region
        $region17: #{tpu_custom_call.1} parent=11 // pred_check
          %p135 = pneg %p81
        $region18: #{tpu_custom_call.1} parent=11 // pred_check_branch
          %137 = sbr.rel (%p135) target = $region20
        $region19: #{tpu_custom_call.1} parent=11 // pred_region
          _
        $region20: #{tpu_custom_call.1} parent=11 // pred_fallthru
          _
      $region12: #{tpu_custom_call.1} parent=5 // pred_fallthru
        _
      %p138 = scmp.lt.s32.totalorder %s13, 2
      // Predicated region
      $region21: #{tpu_custom_call.1} parent=5 // pred_check
        %p139 = pneg %p138
      $region22: #{tpu_custom_call.1} parent=5 // pred_check_branch
        %141 = sbr.rel (%p139) target = $region24
      $region23: #{tpu_custom_call.1} parent=5 // pred_region
        // Predicated region
        $region25: #{tpu_custom_call.1} parent=23 // pred_check
          %p142 = pneg %p33
        $region26: #{tpu_custom_call.1} parent=23 // pred_check_branch
          %144 = sbr.rel (%p142) target = $region28
        $region27: #{tpu_custom_call.1} parent=23 // pred_region
          %s145 = smul.u32 8, %s13
          %p146 = scmp.lt.s32.totalorder %s145, 15
          %s147 = scalar_select %p146, %s145, 15
          %s148 = smul.addr %s147, 8
          %s149 = scalar_lea.vmem %s0, %s148
          %s150 = smul.u32 8, %s13
        $region28: #{tpu_custom_call.1} parent=23 // pred_fallthru
          _
      $region24: #{tpu_custom_call.1} parent=5 // pred_fallthru
        _
      %p151 = scmp.le.s32.totalorder 1, %s13
      %p152 = scmp.lt.s32.totalorder %s13, 3
      %p153 = pnand %p151, %p152
      %p154 = pneg %p153
      // Predicated region
      $region29: #{tpu_custom_call.1} parent=5 // pred_check
        _
      $region30: #{tpu_custom_call.1} parent=5 // pred_check_branch
        %156 = sbr.rel (%p153) target = $region32
      $region31: #{tpu_custom_call.1} parent=5 // pred_region
        %s157 = ssub.s32 %s13, 1
        // Predicated region
        $region33: #{tpu_custom_call.1} parent=31 // pred_check
          %p158 = pneg %p60
        $region34: #{tpu_custom_call.1} parent=31 // pred_check_branch
          %160 = sbr.rel (%p158) target = $region36
        $region35: #{tpu_custom_call.1} parent=31 // pred_region
          %161 = dma.done [#allocation3], 1024
        $region36: #{tpu_custom_call.1} parent=31 // pred_fallthru
          _
        %s162 = smul.u32 8, %s18
        %p163 = scmp.lt.s32.totalorder %s162, 15
        %s164 = scalar_select %p163, %s162, 15
        %s165 = smul.addr %s164, 8
        %s166 = scalar_lea.vmem %s0, %s165
        %p167 = pneg %p39
        %p168 = pneg %p36
        %p169 = pneg %p60
        %p170 = pneg %p57
        %p171 = pneg %p81
        %p172 = pneg %p78
        %p173 = pneg %p107
        %p174 = pneg %p104
        %s175 = sand.u32 %s94, 1
        %s176 = scalar_lea.sflag [#allocation4], %s175
        %s177 = sand.u32 %s94, 1
        %s178 = smul.addr %s177, 16
        %s179 = scalar_lea.vmem [#allocation5], %s178
        %s180 = smul.u32 8, %s18
        %p181 = scmp.lt.s32.totalorder %s180, 15
        %s182 = scalar_select %p181, %s180, 15
        %s183 = smul.addr %s182, 8
        %s184 = scalar_lea.vmem %s0, %s183
        %s185 = smul.u32 8, %s18
        %s186 = smul.u32 2, %s18
        %v188 = vld [vmem:[%s184] sm:$0xff]
        %v189 = vld [vmem:[%s184 + $0x8] sm:$0xff]
        %v190 = vld [vmem:[%s184 + $0x10] sm:$0xff]
        %v191 = vld [vmem:[%s184 + $0x18] sm:$0xff]
        %v192 = vld [vmem:[%s184 + $0x20] sm:$0xff]
        %v193 = vld [vmem:[%s184 + $0x28] sm:$0xff]
        %v194 = vld [vmem:[%s184 + $0x30] sm:$0xff]
        %v195 = vld [vmem:[%s184 + $0x38] sm:$0xff]
        %v196 = vunpack.c.0.s8 %v188
        %v197 = vunpack.c.1.s8 %v188
        %v198 = vunpack.c.2.s8 %v188
        %v199 = vunpack.c.3.s8 %v188
        %v200 = vunpack.c.0.s8 %v189
        %v201 = vunpack.c.1.s8 %v189
        %v202 = vunpack.c.2.s8 %v189
        %v203 = vunpack.c.3.s8 %v189
        %v204 = vunpack.c.0.s8 %v190
        %v205 = vunpack.c.1.s8 %v190
        %v206 = vunpack.c.2.s8 %v190
        %v207 = vunpack.c.3.s8 %v190
        %v208 = vunpack.c.0.s8 %v191
        %v209 = vunpack.c.1.s8 %v191
        %v210 = vunpack.c.2.s8 %v191
        %v211 = vunpack.c.3.s8 %v191
        %v212 = vunpack.c.0.s8 %v192
        %v213 = vunpack.c.1.s8 %v192
        %v214 = vunpack.c.2.s8 %v192
        %v215 = vunpack.c.3.s8 %v192
        %v216 = vunpack.c.0.s8 %v193
        %v217 = vunpack.c.1.s8 %v193
        %v218 = vunpack.c.2.s8 %v193
        %v219 = vunpack.c.3.s8 %v193
        %v220 = vunpack.c.0.s8 %v194
        %v221 = vunpack.c.1.s8 %v194
        %v222 = vunpack.c.2.s8 %v194
        %v223 = vunpack.c.3.s8 %v194
        %v224 = vunpack.c.0.s8 %v195
        %v225 = vunpack.c.1.s8 %v195
        %v226 = vunpack.c.2.s8 %v195
        %v227 = vunpack.c.3.s8 %v195
        %v228 = vand.u32 %v196, 255
        %v229 = vand.u32 %v197, 255
        %v230 = vand.u32 %v198, 255
        %v231 = vand.u32 %v199, 255
        %v232 = vand.u32 %v200, 255
        %v233 = vand.u32 %v201, 255
        %v234 = vand.u32 %v202, 255
        %v235 = vand.u32 %v203, 255
        %v236 = vand.u32 %v204, 255
        %v237 = vand.u32 %v205, 255
        %v238 = vand.u32 %v206, 255
        %v239 = vand.u32 %v207, 255
        %v240 = vand.u32 %v208, 255
        %v241 = vand.u32 %v209, 255
        %v242 = vand.u32 %v210, 255
        %v243 = vand.u32 %v211, 255
        %v244 = vand.u32 %v212, 255
        %v245 = vand.u32 %v213, 255
        %v246 = vand.u32 %v214, 255
        %v247 = vand.u32 %v215, 255
        %v248 = vand.u32 %v216, 255
        %v249 = vand.u32 %v217, 255
        %v250 = vand.u32 %v218, 255
        %v251 = vand.u32 %v219, 255
        %v252 = vand.u32 %v220, 255
        %v253 = vand.u32 %v221, 255
        %v254 = vand.u32 %v222, 255
        %v255 = vand.u32 %v223, 255
        %v256 = vand.u32 %v224, 255
        %v257 = vand.u32 %v225, 255
        %v258 = vand.u32 %v226, 255
        %v259 = vand.u32 %v227, 255
        %v260 = vcvt.s32.f32 %v228
        %v261 = vcvt.s32.f32 %v229
        %v262 = vcvt.s32.f32 %v230
        %v263 = vcvt.s32.f32 %v231
        %v264 = vcvt.s32.f32 %v232
        %v265 = vcvt.s32.f32 %v233
        %v266 = vcvt.s32.f32 %v234
        %v267 = vcvt.s32.f32 %v235
        %v268 = vcvt.s32.f32 %v236
        %v269 = vcvt.s32.f32 %v237
        %v270 = vcvt.s32.f32 %v238
        %v271 = vcvt.s32.f32 %v239
        %v272 = vcvt.s32.f32 %v240
        %v273 = vcvt.s32.f32 %v241
        %v274 = vcvt.s32.f32 %v242
        %v275 = vcvt.s32.f32 %v243
        %v276 = vcvt.s32.f32 %v244
        %v277 = vcvt.s32.f32 %v245
        %v278 = vcvt.s32.f32 %v246
        %v279 = vcvt.s32.f32 %v247
        %v280 = vcvt.s32.f32 %v248
        %v281 = vcvt.s32.f32 %v249
        %v282 = vcvt.s32.f32 %v250
        %v283 = vcvt.s32.f32 %v251
        %v284 = vcvt.s32.f32 %v252
        %v285 = vcvt.s32.f32 %v253
        %v286 = vcvt.s32.f32 %v254
        %v287 = vcvt.s32.f32 %v255
        %v288 = vcvt.s32.f32 %v256
        %v289 = vcvt.s32.f32 %v257
        %v290 = vcvt.s32.f32 %v258
        %v291 = vcvt.s32.f32 %v259
        %v292 = vunpack.c.l.u8.bf16 %v188
        %v293 = vunpack.c.h.u8.bf16 %v188
        %v294 = vunpack.c.l.u8.bf16 %v189
        %v295 = vunpack.c.h.u8.bf16 %v189
        %v296 = vunpack.c.l.u8.bf16 %v190
        %v297 = vunpack.c.h.u8.bf16 %v190
        %v298 = vunpack.c.l.u8.bf16 %v191
        %v299 = vunpack.c.h.u8.bf16 %v191
        %v300 = vunpack.c.l.u8.bf16 %v192
        %v301 = vunpack.c.h.u8.bf16 %v192
        %v302 = vunpack.c.l.u8.bf16 %v193
        %v303 = vunpack.c.h.u8.bf16 %v193
        %v304 = vunpack.c.l.u8.bf16 %v194
        %v305 = vunpack.c.h.u8.bf16 %v194
        %v306 = vunpack.c.l.u8.bf16 %v195
        %v307 = vunpack.c.h.u8.bf16 %v195
        %v308 = vld [vmem:[#allocation2] sm:$0xf]
        %v309 = vld [vmem:[#allocation2 + $0x4] sm:$0xf]
        %v310 = vld [vmem:[#allocation2 + $0x8] sm:$0xf]
        %v311 = vld [vmem:[#allocation2 + $0xc] sm:$0xf]
        %v312 = vld [vmem:[#allocation2 + $0x10] sm:$0xf]
        %v313 = vld [vmem:[#allocation2 + $0x14] sm:$0xf]
        %v314 = vld [vmem:[#allocation2 + $0x18] sm:$0xf]
        %v315 = vld [vmem:[#allocation2 + $0x1c] sm:$0xf]
        %v316 = vld [vmem:[#allocation2 + $0x20] sm:$0xf]
        %v317 = vld [vmem:[#allocation2 + $0x24] sm:$0xf]
        %v318 = vld [vmem:[#allocation2 + $0x28] sm:$0xf]
        %v319 = vld [vmem:[#allocation2 + $0x2c] sm:$0xf]
        %v320 = vld [vmem:[#allocation2 + $0x30] sm:$0xf]
        %v321 = vld [vmem:[#allocation2 + $0x34] sm:$0xf]
        %v322 = vld [vmem:[#allocation2 + $0x38] sm:$0xf]
        %v323 = vld [vmem:[#allocation2 + $0x3c] sm:$0xf]
        %v340 = vunpack.c.l.b16 %v308
        %v341 = vunpack.c.l.b16 %v309
        %v342 = vunpack.c.l.b16 %v310
        %v343 = vunpack.c.l.b16 %v311
        %v344 = vunpack.c.l.b16 %v312
        %v345 = vunpack.c.l.b16 %v313
        %v346 = vunpack.c.l.b16 %v314
        %v347 = vunpack.c.l.b16 %v315
        %v348 = vunpack.c.l.b16 %v316
        %v349 = vunpack.c.l.b16 %v317
        %v350 = vunpack.c.l.b16 %v318
        %v351 = vunpack.c.l.b16 %v319
        %v352 = vunpack.c.l.b16 %v320
        %v353 = vunpack.c.l.b16 %v321
        %v354 = vunpack.c.l.b16 %v322
        %v355 = vunpack.c.l.b16 %v323
        %v356 = vpack.c.b16 %v341, %v340
        %v357 = vpack.c.b16 %v343, %v342
        %v358 = vpack.c.b16 %v345, %v344
        %v359 = vpack.c.b16 %v347, %v346
        %v360 = vpack.c.b16 %v349, %v348
        %v361 = vpack.c.b16 %v351, %v350
        %v362 = vpack.c.b16 %v353, %v352
        %v363 = vpack.c.b16 %v355, %v354
        %372 = vmatprep.subr.bf16.mxu0 0
        %373 = vmatpush1.bf16.xpose.msra.mxu0 %v292
        %374 = vmatprep.subr.bf16.mxu0 0
        %375 = vmatpush1.bf16.xpose.msra.mxu0 %v293
        %376 = vmatprep.subr.bf16.mxu0 0
        %377 = vmatpush1.bf16.xpose.msra.mxu0 %v294
        %378 = vmatprep.subr.bf16.mxu0 0
        %379 = vmatpush1.bf16.xpose.msra.mxu0 %v295
        %380 = vmatprep.subr.bf16.mxu0 0
        %381 = vmatpush1.bf16.xpose.msra.mxu0 %v296
        %382 = vmatprep.subr.bf16.mxu0 0
        %383 = vmatpush1.bf16.xpose.msra.mxu0 %v297
        %384 = vmatprep.subr.bf16.mxu0 0
        %385 = vmatpush1.bf16.xpose.msra.mxu0 %v298
        %386 = vmatprep.subr.bf16.mxu0 0
        %387 = vmatpush1.bf16.xpose.msra.mxu0 %v299
        %388 = vmatprep.subr.bf16.mxu0 0
        %389 = vmatpush1.bf16.xpose.msra.mxu0 %v300
        %390 = vmatprep.subr.bf16.mxu0 0
        %391 = vmatpush1.bf16.xpose.msra.mxu0 %v301
        %392 = vmatprep.subr.bf16.mxu0 0
        %393 = vmatpush1.bf16.xpose.msra.mxu0 %v302
        %394 = vmatprep.subr.bf16.mxu0 0
        %395 = vmatpush1.bf16.xpose.msra.mxu0 %v303
        %396 = vmatprep.subr.bf16.mxu0 0
        %397 = vmatpush1.bf16.xpose.msra.mxu0 %v304
        %398 = vmatprep.subr.bf16.mxu0 0
        %399 = vmatpush1.bf16.xpose.msra.mxu0 %v305
        %400 = vmatprep.subr.bf16.mxu0 0
        %401 = vmatpush1.bf16.xpose.msra.mxu0 %v306
        %402 = vmatprep.subr.bf16.mxu0 0
        %403 = vmatpush1.bf16.xpose.msra.mxu0 %v307
        %404 = vmatprep.mubr.bf16.mxu0 0
        %405 = vmatmul.mubr.bf16.gmra.mrb[0].mxu0 %v356
        %v406 = vpop.f32.mrb[0].mxu0
        %v407 = vadd.f32 0.0, %v406
        %v408 = vpop.f32.mrb[0].mxu0
        %v409 = vadd.f32 0.0, %v408
        %v410 = vpop.f32.mrb[0].mxu0
        %v411 = vadd.f32 0.0, %v410
        %v412 = vpop.f32.mrb[0].mxu0
        %v413 = vadd.f32 0.0, %v412
        %414 = vmatprep.mubr.bf16.mxu0 0
        %415 = vmatmul.mubr.bf16.gmra.mrb[0].mxu0 %v357
        %v416 = vpop.f32.mrb[0].mxu0
        %v417 = vadd.f32 0.0, %v416
        %v418 = vpop.f32.mrb[0].mxu0
        %v419 = vadd.f32 0.0, %v418
        %v420 = vpop.f32.mrb[0].mxu0
        %v421 = vadd.f32 0.0, %v420
        %v422 = vpop.f32.mrb[0].mxu0
        %v423 = vadd.f32 0.0, %v422
        %424 = vmatprep.mubr.bf16.mxu0 0
        %425 = vmatmul.mubr.bf16.gmra.mrb[0].mxu0 %v358
        %v426 = vpop.f32.mrb[0].mxu0
        %v427 = vadd.f32 0.0, %v426
        %v428 = vpop.f32.mrb[0].mxu0
        %v429 = vadd.f32 0.0, %v428
        %v430 = vpop.f32.mrb[0].mxu0
        %v431 = vadd.f32 0.0, %v430
        %v432 = vpop.f32.mrb[0].mxu0
        %v433 = vadd.f32 0.0, %v432
        %434 = vmatprep.mubr.bf16.mxu0 0
        %435 = vmatmul.mubr.bf16.gmra.mrb[0].mxu0 %v359
        %v436 = vpop.f32.mrb[0].mxu0
        %v437 = vadd.f32 0.0, %v436
        %v438 = vpop.f32.mrb[0].mxu0
        %v439 = vadd.f32 0.0, %v438
        %v440 = vpop.f32.mrb[0].mxu0
        %v441 = vadd.f32 0.0, %v440
        %v442 = vpop.f32.mrb[0].mxu0
        %v443 = vadd.f32 0.0, %v442
        %444 = vmatprep.mubr.bf16.mxu0 0
        %445 = vmatmul.mubr.bf16.gmra.mrb[0].mxu0 %v360
        %v446 = vpop.f32.mrb[0].mxu0
        %v447 = vadd.f32 0.0, %v446
        %v448 = vpop.f32.mrb[0].mxu0
        %v449 = vadd.f32 0.0, %v448
        %v450 = vpop.f32.mrb[0].mxu0
        %v451 = vadd.f32 0.0, %v450
        %v452 = vpop.f32.mrb[0].mxu0
        %v453 = vadd.f32 0.0, %v452
        %454 = vmatprep.mubr.bf16.mxu0 0
        %455 = vmatmul.mubr.bf16.gmra.mrb[0].mxu0 %v361
        %v456 = vpop.f32.mrb[0].mxu0
        %v457 = vadd.f32 0.0, %v456
        %v458 = vpop.f32.mrb[0].mxu0
        %v459 = vadd.f32 0.0, %v458
        %v460 = vpop.f32.mrb[0].mxu0
        %v461 = vadd.f32 0.0, %v460
        %v462 = vpop.f32.mrb[0].mxu0
        %v463 = vadd.f32 0.0, %v462
        %464 = vmatprep.mubr.bf16.mxu0 0
        %465 = vmatmul.mubr.bf16.gmra.mrb[0].mxu0 %v362
        %v466 = vpop.f32.mrb[0].mxu0
        %v467 = vadd.f32 0.0, %v466
        %v468 = vpop.f32.mrb[0].mxu0
        %v469 = vadd.f32 0.0, %v468
        %v470 = vpop.f32.mrb[0].mxu0
        %v471 = vadd.f32 0.0, %v470
        %v472 = vpop.f32.mrb[0].mxu0
        %v473 = vadd.f32 0.0, %v472
        %474 = vmatprep.mubr.bf16.mxu0 0
        %475 = vmatmul.mubr.bf16.gmra.mrb[0].mxu0 %v363
        %v476 = vpop.f32.mrb[0].mxu0
        %v477 = vadd.f32 0.0, %v476
        %v478 = vpop.f32.mrb[0].mxu0
        %v479 = vadd.f32 0.0, %v478
        %v480 = vpop.f32.mrb[0].mxu0
        %v481 = vadd.f32 0.0, %v480
        %v482 = vpop.f32.mrb[0].mxu0
        %v483 = vadd.f32 0.0, %v482
        %484 = vdwg.mxu0
        %485 = vxpose.xlu0.b32.start [1/16] %v260, 128
        %486 = vxpose.xlu0.b32.cont [2/16] %v261, 128
        %487 = vxpose.xlu0.b32.cont [3/16] %v262, 128
        %488 = vxpose.xlu0.b32.cont [4/16] %v263, 128
        %489 = vxpose.xlu0.b32.cont [5/16] %v264, 128
        %490 = vxpose.xlu0.b32.cont [6/16] %v265, 128
        %491 = vxpose.xlu0.b32.cont [7/16] %v266, 128
        %492 = vxpose.xlu0.b32.cont [8/16] %v267, 128
        %493 = vxpose.xlu0.b32.cont [9/16] %v268, 128
        %494 = vxpose.xlu0.b32.cont [10/16] %v269, 128
        %495 = vxpose.xlu0.b32.cont [11/16] %v270, 128
        %496 = vxpose.xlu0.b32.cont [12/16] %v271, 128
        %497 = vxpose.xlu0.b32.cont [13/16] %v272, 128
        %498 = vxpose.xlu0.b32.cont [14/16] %v273, 128
        %499 = vxpose.xlu0.b32.cont [15/16] %v274, 128
        %500 = vxpose.xlu0.b32.end [16/16] %v275, 128
        %v501 = vpop.trf.xlu0
        %v502 = vpop.trf.xlu0
        %v503 = vpop.trf.xlu0
        %v504 = vpop.trf.xlu0
        %v505 = vpop.trf.xlu0
        %v506 = vpop.trf.xlu0
        %v507 = vpop.trf.xlu0
        %v508 = vpop.trf.xlu0
        %v509 = vpop.trf.xlu0
        %v510 = vpop.trf.xlu0
        %v511 = vpop.trf.xlu0
        %v512 = vpop.trf.xlu0
        %v513 = vpop.trf.xlu0
        %v514 = vpop.trf.xlu0
        %v515 = vpop.trf.xlu0
        %v516 = vpop.trf.xlu0
        %517 = vxpose.xlu0.b32.start [1/16] %v276, 128
        %518 = vxpose.xlu0.b32.cont [2/16] %v277, 128
        %519 = vxpose.xlu0.b32.cont [3/16] %v278, 128
        %520 = vxpose.xlu0.b32.cont [4/16] %v279, 128
        %521 = vxpose.xlu0.b32.cont [5/16] %v280, 128
        %522 = vxpose.xlu0.b32.cont [6/16] %v281, 128
        %523 = vxpose.xlu0.b32.cont [7/16] %v282, 128
        %524 = vxpose.xlu0.b32.cont [8/16] %v283, 128
        %525 = vxpose.xlu0.b32.cont [9/16] %v284, 128
        %526 = vxpose.xlu0.b32.cont [10/16] %v285, 128
        %527 = vxpose.xlu0.b32.cont [11/16] %v286, 128
        %528 = vxpose.xlu0.b32.cont [12/16] %v287, 128
        %529 = vxpose.xlu0.b32.cont [13/16] %v288, 128
        %530 = vxpose.xlu0.b32.cont [14/16] %v289, 128
        %531 = vxpose.xlu0.b32.cont [15/16] %v290, 128
        %532 = vxpose.xlu0.b32.end [16/16] %v291, 128
        %v533 = vpop.trf.xlu0
        %v534 = vpop.trf.xlu0
        %v535 = vpop.trf.xlu0
        %v536 = vpop.trf.xlu0
        %v537 = vpop.trf.xlu0
        %v538 = vpop.trf.xlu0
        %v539 = vpop.trf.xlu0
        %v540 = vpop.trf.xlu0
        %v541 = vpop.trf.xlu0
        %v542 = vpop.trf.xlu0
        %v543 = vpop.trf.xlu0
        %v544 = vpop.trf.xlu0
        %v545 = vpop.trf.xlu0
        %v546 = vpop.trf.xlu0
        %v547 = vpop.trf.xlu0
        %v548 = vpop.trf.xlu0
        %v549 = vmul.f32 %v501, %v501
        %v550 = vmul.f32 %v533, %v533
        %v551 = vmul.f32 %v502, %v502
        %v552 = vmul.f32 %v534, %v534
        %v553 = vmul.f32 %v503, %v503
        %v554 = vmul.f32 %v535, %v535
        %v555 = vmul.f32 %v504, %v504
        %v556 = vmul.f32 %v536, %v536
        %v557 = vmul.f32 %v505, %v505
        %v558 = vmul.f32 %v537, %v537
        %v559 = vmul.f32 %v506, %v506
        %v560 = vmul.f32 %v538, %v538
        %v561 = vmul.f32 %v507, %v507
        %v562 = vmul.f32 %v539, %v539
        %v563 = vmul.f32 %v508, %v508
        %v564 = vmul.f32 %v540, %v540
        %v565 = vmul.f32 %v509, %v509
        %v566 = vmul.f32 %v541, %v541
        %v567 = vmul.f32 %v510, %v510
        %v568 = vmul.f32 %v542, %v542
        %v569 = vmul.f32 %v511, %v511
        %v570 = vmul.f32 %v543, %v543
        %v571 = vmul.f32 %v512, %v512
        %v572 = vmul.f32 %v544, %v544
        %v573 = vmul.f32 %v513, %v513
        %v574 = vmul.f32 %v545, %v545
        %v575 = vmul.f32 %v514, %v514
        %v576 = vmul.f32 %v546, %v546
        %v577 = vmul.f32 %v515, %v515
        %v578 = vmul.f32 %v547, %v547
        %v579 = vmul.f32 %v516, %v516
        %v580 = vmul.f32 %v548, %v548
        %v581 = vadd.f32 %v549, %v551
        %v582 = vadd.f32 %v581, %v553
        %v583 = vadd.f32 %v582, %v555
        %v584 = vadd.f32 %v583, %v557
        %v585 = vadd.f32 %v584, %v559
        %v586 = vadd.f32 %v585, %v561
        %v587 = vadd.f32 %v586, %v563
        %v588 = vadd.f32 %v587, %v565
        %v589 = vadd.f32 %v588, %v567
        %v590 = vadd.f32 %v589, %v569
        %v591 = vadd.f32 %v590, %v571
        %v592 = vadd.f32 %v591, %v573
        %v593 = vadd.f32 %v592, %v575
        %v594 = vadd.f32 %v593, %v577
        %v595 = vadd.f32 %v594, %v579
        %v596 = vrot.slane %v595, 4
        %v597 = vadd.f32 %v595, %v596
        %v598 = vrot.slane %v597, 2
        %v599 = vadd.f32 %v597, %v598
        %v600 = vrot.slane %v599, 1
        %v601 = vadd.f32 %v599, %v600
        %v602 = vadd.f32 %v550, %v552
        %v603 = vadd.f32 %v602, %v554
        %v604 = vadd.f32 %v603, %v556
        %v605 = vadd.f32 %v604, %v558
        %v606 = vadd.f32 %v605, %v560
        %v607 = vadd.f32 %v606, %v562
        %v608 = vadd.f32 %v607, %v564
        %v609 = vadd.f32 %v608, %v566
        %v610 = vadd.f32 %v609, %v568
        %v611 = vadd.f32 %v610, %v570
        %v612 = vadd.f32 %v611, %v572
        %v613 = vadd.f32 %v612, %v574
        %v614 = vadd.f32 %v613, %v576
        %v615 = vadd.f32 %v614, %v578
        %v616 = vadd.f32 %v615, %v580
        %v617 = vrot.slane %v616, 4
        %v618 = vadd.f32 %v616, %v617
        %v619 = vrot.slane %v618, 2
        %v620 = vadd.f32 %v618, %v619
        %v621 = vrot.slane %v620, 1
        %v622 = vadd.f32 %v620, %v621
        %v623 = vld [vmem:[%s2] sm:$0xff]
        %v624 = vld [vmem:[%s2 + $0x8] sm:$0xff]
        %v625 = vld [vmem:[%s2 + $0x10] sm:$0xff]
        %v626 = vld [vmem:[%s2 + $0x18] sm:$0xff]
        %v627 = vld [vmem:[%s2 + $0x20] sm:$0xff]
        %v628 = vld [vmem:[%s2 + $0x28] sm:$0xff]
        %v629 = vld [vmem:[%s2 + $0x30] sm:$0xff]
        %v630 = vld [vmem:[%s2 + $0x38] sm:$0xff]
        %v631 = vld [vmem:[%s2 + $0x40] sm:$0xff]
        %v632 = vld [vmem:[%s2 + $0x48] sm:$0xff]
        %v633 = vld [vmem:[%s2 + $0x50] sm:$0xff]
        %v634 = vld [vmem:[%s2 + $0x58] sm:$0xff]
        %v635 = vld [vmem:[%s2 + $0x60] sm:$0xff]
        %v636 = vld [vmem:[%s2 + $0x68] sm:$0xff]
        %v637 = vld [vmem:[%s2 + $0x70] sm:$0xff]
        %v638 = vld [vmem:[%s2 + $0x78] sm:$0xff]
        %v639 = vmul.f32 %v407, 2.0
        %v640 = vmul.f32 %v409, 2.0
        %v641 = vmul.f32 %v411, 2.0
        %v642 = vmul.f32 %v413, 2.0
        %v643 = vmul.f32 %v417, 2.0
        %v644 = vmul.f32 %v419, 2.0
        %v645 = vmul.f32 %v421, 2.0
        %v646 = vmul.f32 %v423, 2.0
        %v647 = vmul.f32 %v427, 2.0
        %v648 = vmul.f32 %v429, 2.0
        %v649 = vmul.f32 %v431, 2.0
        %v650 = vmul.f32 %v433, 2.0
        %v651 = vmul.f32 %v437, 2.0
        %v652 = vmul.f32 %v439, 2.0
        %v653 = vmul.f32 %v441, 2.0
        %v654 = vmul.f32 %v443, 2.0
        %v655 = vmul.f32 %v447, 2.0
        %v656 = vmul.f32 %v449, 2.0
        %v657 = vmul.f32 %v451, 2.0
        %v658 = vmul.f32 %v453, 2.0
        %v659 = vmul.f32 %v457, 2.0
        %v660 = vmul.f32 %v459, 2.0
        %v661 = vmul.f32 %v461, 2.0
        %v662 = vmul.f32 %v463, 2.0
        %v663 = vmul.f32 %v467, 2.0
        %v664 = vmul.f32 %v469, 2.0
        %v665 = vmul.f32 %v471, 2.0
        %v666 = vmul.f32 %v473, 2.0
        %v667 = vmul.f32 %v477, 2.0
        %v668 = vmul.f32 %v479, 2.0
        %v669 = vmul.f32 %v481, 2.0
        %v670 = vmul.f32 %v483, 2.0
        %672 = vset.pattern.permute.xlu0 0
        %673 = vperm.xlu0 %672, %v623
        %v674 = vpop.permute.xlu0 %673
        %677 = vset.pattern.permute.xlu0 0
        %678 = vperm.xlu0 %677, %v624
        %v679 = vpop.permute.xlu0 %678
        %682 = vset.pattern.permute.xlu0 0
        %683 = vperm.xlu0 %682, %v625
        %v684 = vpop.permute.xlu0 %683
        %687 = vset.pattern.permute.xlu0 0
        %688 = vperm.xlu0 %687, %v626
        %v689 = vpop.permute.xlu0 %688
        %692 = vset.pattern.permute.xlu0 0
        %693 = vperm.xlu0 %692, %v627
        %v694 = vpop.permute.xlu0 %693
        %697 = vset.pattern.permute.xlu0 0
        %698 = vperm.xlu0 %697, %v628
        %v699 = vpop.permute.xlu0 %698
        %702 = vset.pattern.permute.xlu0 0
        %703 = vperm.xlu0 %702, %v629
        %v704 = vpop.permute.xlu0 %703
        %707 = vset.pattern.permute.xlu0 0
        %708 = vperm.xlu0 %707, %v630
        %v709 = vpop.permute.xlu0 %708
        %712 = vset.pattern.permute.xlu0 0
        %713 = vperm.xlu0 %712, %v631
        %v714 = vpop.permute.xlu0 %713
        %717 = vset.pattern.permute.xlu0 0
        %718 = vperm.xlu0 %717, %v632
        %v719 = vpop.permute.xlu0 %718
        %722 = vset.pattern.permute.xlu0 0
        %723 = vperm.xlu0 %722, %v633
        %v724 = vpop.permute.xlu0 %723
        %727 = vset.pattern.permute.xlu0 0
        %728 = vperm.xlu0 %727, %v634
        %v729 = vpop.permute.xlu0 %728
        %732 = vset.pattern.permute.xlu0 0
        %733 = vperm.xlu0 %732, %v635
        %v734 = vpop.permute.xlu0 %733
        %737 = vset.pattern.permute.xlu0 0
        %738 = vperm.xlu0 %737, %v636
        %v739 = vpop.permute.xlu0 %738
        %742 = vset.pattern.permute.xlu0 0
        %743 = vperm.xlu0 %742, %v637
        %v744 = vpop.permute.xlu0 %743
        %747 = vset.pattern.permute.xlu0 0
        %748 = vperm.xlu0 %747, %v638
        %v749 = vpop.permute.xlu0 %748
        %v751 = vsub.f32 %v674, %v639
        %v752 = vsub.f32 %v674, %v640
        %v753 = vsub.f32 %v679, %v641
        %v754 = vsub.f32 %v679, %v642
        %v755 = vsub.f32 %v684, %v643
        %v756 = vsub.f32 %v684, %v644
        %v757 = vsub.f32 %v689, %v645
        %v758 = vsub.f32 %v689, %v646
        %v759 = vsub.f32 %v694, %v647
        %v760 = vsub.f32 %v694, %v648
        %v761 = vsub.f32 %v699, %v649
        %v762 = vsub.f32 %v699, %v650
        %v763 = vsub.f32 %v704, %v651
        %v764 = vsub.f32 %v704, %v652
        %v765 = vsub.f32 %v709, %v653
        %v766 = vsub.f32 %v709, %v654
        %v767 = vsub.f32 %v714, %v655
        %v768 = vsub.f32 %v714, %v656
        %v769 = vsub.f32 %v719, %v657
        %v770 = vsub.f32 %v719, %v658
        %v771 = vsub.f32 %v724, %v659
        %v772 = vsub.f32 %v724, %v660
        %v773 = vsub.f32 %v729, %v661
        %v774 = vsub.f32 %v729, %v662
        %v775 = vsub.f32 %v734, %v663
        %v776 = vsub.f32 %v734, %v664
        %v777 = vsub.f32 %v739, %v665
        %v778 = vsub.f32 %v739, %v666
        %v779 = vsub.f32 %v744, %v667
        %v780 = vsub.f32 %v744, %v668
        %v781 = vsub.f32 %v749, %v669
        %v782 = vsub.f32 %v749, %v670
        %v783 = vadd.f32 %v751, %v601
        %v784 = vadd.f32 %v752, %v622
        %v785 = vadd.f32 %v753, %v601
        %v786 = vadd.f32 %v754, %v622
        %v787 = vadd.f32 %v755, %v601
        %v788 = vadd.f32 %v756, %v622
        %v789 = vadd.f32 %v757, %v601
        %v790 = vadd.f32 %v758, %v622
        %v791 = vadd.f32 %v759, %v601
        %v792 = vadd.f32 %v760, %v622
        %v793 = vadd.f32 %v761, %v601
        %v794 = vadd.f32 %v762, %v622
        %v795 = vadd.f32 %v763, %v601
        %v796 = vadd.f32 %v764, %v622
        %v797 = vadd.f32 %v765, %v601
        %v798 = vadd.f32 %v766, %v622
        %v799 = vadd.f32 %v767, %v601
        %v800 = vadd.f32 %v768, %v622
        %v801 = vadd.f32 %v769, %v601
        %v802 = vadd.f32 %v770, %v622
        %v803 = vadd.f32 %v771, %v601
        %v804 = vadd.f32 %v772, %v622
        %v805 = vadd.f32 %v773, %v601
        %v806 = vadd.f32 %v774, %v622
        %v807 = vadd.f32 %v775, %v601
        %v808 = vadd.f32 %v776, %v622
        %v809 = vadd.f32 %v777, %v601
        %v810 = vadd.f32 %v778, %v622
        %v811 = vadd.f32 %v779, %v601
        %v812 = vadd.f32 %v780, %v622
        %v813 = vadd.f32 %v781, %v601
        %v814 = vadd.f32 %v782, %v622
        %v815 = vlaneseq
        %v816 = vshrl.u32 %v815, 7
        %v817 = vadd.s32 %v816, 8
        %v818 = vadd.s32 %v816, 16
        %v819 = vadd.s32 %v816, 24
        %v820 = vadd.s32 %v816, 32
        %v821 = vadd.s32 %v816, 40
        %v822 = vadd.s32 %v816, 48
        %v823 = vadd.s32 %v816, 56
        %v824 = vadd.s32 %v816, 64
        %v825 = vadd.s32 %v816, 72
        %v826 = vadd.s32 %v816, 80
        %v827 = vadd.s32 %v816, 88
        %v828 = vadd.s32 %v816, 96
        %v829 = vadd.s32 %v816, 104
        %v830 = vadd.s32 %v816, 112
        %v831 = vadd.s32 %v816, 120
        %vm832 = vcmp.lt.f32.partialorder %v783, 0.5
        %vm833 = vcmp.lt.f32.partialorder %v784, 0.5
        %vm834 = vcmp.lt.f32.partialorder %v785, 0.5
        %vm835 = vcmp.lt.f32.partialorder %v786, 0.5
        %vm836 = vcmp.lt.f32.partialorder %v787, 0.5
        %vm837 = vcmp.lt.f32.partialorder %v788, 0.5
        %vm838 = vcmp.lt.f32.partialorder %v789, 0.5
        %vm839 = vcmp.lt.f32.partialorder %v790, 0.5
        %vm840 = vcmp.lt.f32.partialorder %v791, 0.5
        %vm841 = vcmp.lt.f32.partialorder %v792, 0.5
        %vm842 = vcmp.lt.f32.partialorder %v793, 0.5
        %vm843 = vcmp.lt.f32.partialorder %v794, 0.5
        %vm844 = vcmp.lt.f32.partialorder %v795, 0.5
        %vm845 = vcmp.lt.f32.partialorder %v796, 0.5
        %vm846 = vcmp.lt.f32.partialorder %v797, 0.5
        %vm847 = vcmp.lt.f32.partialorder %v798, 0.5
        %vm848 = vcmp.lt.f32.partialorder %v799, 0.5
        %vm849 = vcmp.lt.f32.partialorder %v800, 0.5
        %vm850 = vcmp.lt.f32.partialorder %v801, 0.5
        %vm851 = vcmp.lt.f32.partialorder %v802, 0.5
        %vm852 = vcmp.lt.f32.partialorder %v803, 0.5
        %vm853 = vcmp.lt.f32.partialorder %v804, 0.5
        %vm854 = vcmp.lt.f32.partialorder %v805, 0.5
        %vm855 = vcmp.lt.f32.partialorder %v806, 0.5
        %vm856 = vcmp.lt.f32.partialorder %v807, 0.5
        %vm857 = vcmp.lt.f32.partialorder %v808, 0.5
        %vm858 = vcmp.lt.f32.partialorder %v809, 0.5
        %vm859 = vcmp.lt.f32.partialorder %v810, 0.5
        %vm860 = vcmp.lt.f32.partialorder %v811, 0.5
        %vm861 = vcmp.lt.f32.partialorder %v812, 0.5
        %vm862 = vcmp.lt.f32.partialorder %v813, 0.5
        %vm863 = vcmp.lt.f32.partialorder %v814, 0.5
        %vm864 = vcmp.lt.s32.totalorder %v816, 8
        %vm865 = vcmp.lt.s32.totalorder %v817, 8
        %vm866 = vcmp.lt.s32.totalorder %v818, 8
        %vm867 = vcmp.lt.s32.totalorder %v819, 8
        %vm868 = vcmp.lt.s32.totalorder %v820, 8
        %vm869 = vcmp.lt.s32.totalorder %v821, 8
        %vm870 = vcmp.lt.s32.totalorder %v822, 8
        %vm871 = vcmp.lt.s32.totalorder %v823, 8
        %vm872 = vcmp.lt.s32.totalorder %v824, 8
        %vm873 = vcmp.lt.s32.totalorder %v825, 8
        %vm874 = vcmp.lt.s32.totalorder %v826, 8
        %vm875 = vcmp.lt.s32.totalorder %v827, 8
        %vm876 = vcmp.lt.s32.totalorder %v828, 8
        %vm877 = vcmp.lt.s32.totalorder %v829, 8
        %vm878 = vcmp.lt.s32.totalorder %v830, 8
        %vm879 = vcmp.lt.s32.totalorder %v831, 8
        %vm880 = vmand %vm832, %vm864
        %vm881 = vmand %vm833, %vm864
        %vm882 = vmand %vm834, %vm865
        %vm883 = vmand %vm835, %vm865
        %vm884 = vmand %vm836, %vm866
        %vm885 = vmand %vm837, %vm866
        %vm886 = vmand %vm838, %vm867
        %vm887 = vmand %vm839, %vm867
        %vm888 = vmand %vm840, %vm868
        %vm889 = vmand %vm841, %vm868
        %vm890 = vmand %vm842, %vm869
        %vm891 = vmand %vm843, %vm869
        %vm892 = vmand %vm844, %vm870
        %vm893 = vmand %vm845, %vm870
        %vm894 = vmand %vm846, %vm871
        %vm895 = vmand %vm847, %vm871
        %vm896 = vmand %vm848, %vm872
        %vm897 = vmand %vm849, %vm872
        %vm898 = vmand %vm850, %vm873
        %vm899 = vmand %vm851, %vm873
        %vm900 = vmand %vm852, %vm874
        %vm901 = vmand %vm853, %vm874
        %vm902 = vmand %vm854, %vm875
        %vm903 = vmand %vm855, %vm875
        %vm904 = vmand %vm856, %vm876
        %vm905 = vmand %vm857, %vm876
        %vm906 = vmand %vm858, %vm877
        %vm907 = vmand %vm859, %vm877
        %vm908 = vmand %vm860, %vm878
        %vm909 = vmand %vm861, %vm878
        %vm910 = vmand %vm862, %vm879
        %vm911 = vmand %vm863, %vm879
        %v912 = vsel %vm880, %v816, 1073741824
        %v913 = vsel %vm881, %v816, 1073741824
        %v914 = vsel %vm882, %v817, 1073741824
        %v915 = vsel %vm883, %v817, 1073741824
        %v916 = vsel %vm884, %v818, 1073741824
        %v917 = vsel %vm885, %v818, 1073741824
        %v918 = vsel %vm886, %v819, 1073741824
        %v919 = vsel %vm887, %v819, 1073741824
        %v920 = vsel %vm888, %v820, 1073741824
        %v921 = vsel %vm889, %v820, 1073741824
        %v922 = vsel %vm890, %v821, 1073741824
        %v923 = vsel %vm891, %v821, 1073741824
        %v924 = vsel %vm892, %v822, 1073741824
        %v925 = vsel %vm893, %v822, 1073741824
        %v926 = vsel %vm894, %v823, 1073741824
        %v927 = vsel %vm895, %v823, 1073741824
        %v928 = vsel %vm896, %v824, 1073741824
        %v929 = vsel %vm897, %v824, 1073741824
        %v930 = vsel %vm898, %v825, 1073741824
        %v931 = vsel %vm899, %v825, 1073741824
        %v932 = vsel %vm900, %v826, 1073741824
        %v933 = vsel %vm901, %v826, 1073741824
        %v934 = vsel %vm902, %v827, 1073741824
        %v935 = vsel %vm903, %v827, 1073741824
        %v936 = vsel %vm904, %v828, 1073741824
        %v937 = vsel %vm905, %v828, 1073741824
        %v938 = vsel %vm906, %v829, 1073741824
        %v939 = vsel %vm907, %v829, 1073741824
        %v940 = vsel %vm908, %v830, 1073741824
        %v941 = vsel %vm909, %v830, 1073741824
        %v942 = vsel %vm910, %v831, 1073741824
        %v943 = vsel %vm911, %v831, 1073741824
        %vm944 = vcmp.lt.s32.totalorder %v912, %v916
        %v945 = vsel %vm944, %v912, %v916
        %vm946 = vcmp.lt.s32.totalorder %v914, %v918
        %v947 = vsel %vm946, %v914, %v918
        %vm948 = vcmp.lt.s32.totalorder %v945, %v920
        %v949 = vsel %vm948, %v945, %v920
        %vm950 = vcmp.lt.s32.totalorder %v947, %v922
        %v951 = vsel %vm950, %v947, %v922
        %vm952 = vcmp.lt.s32.totalorder %v949, %v924
        %v953 = vsel %vm952, %v949, %v924
        %vm954 = vcmp.lt.s32.totalorder %v951, %v926
        %v955 = vsel %vm954, %v951, %v926
        %vm956 = vcmp.lt.s32.totalorder %v953, %v928
        %v957 = vsel %vm956, %v953, %v928
        %vm958 = vcmp.lt.s32.totalorder %v955, %v930
        %v959 = vsel %vm958, %v955, %v930
        %vm960 = vcmp.lt.s32.totalorder %v957, %v932
        %v961 = vsel %vm960, %v957, %v932
        %vm962 = vcmp.lt.s32.totalorder %v959, %v934
        %v963 = vsel %vm962, %v959, %v934
        %vm964 = vcmp.lt.s32.totalorder %v961, %v936
        %v965 = vsel %vm964, %v961, %v936
        %vm966 = vcmp.lt.s32.totalorder %v963, %v938
        %v967 = vsel %vm966, %v963, %v938
        %vm968 = vcmp.lt.s32.totalorder %v965, %v940
        %v969 = vsel %vm968, %v965, %v940
        %vm970 = vcmp.lt.s32.totalorder %v967, %v942
        %v971 = vsel %vm970, %v967, %v942
        %vm972 = vcmp.lt.s32.totalorder %v969, %v971
        %v973 = vsel %vm972, %v969, %v971
        %v974 = vrot.slane %v973, 4
        %vm975 = vcmp.lt.s32.totalorder %v973, %v974
        %v976 = vsel %vm975, %v973, %v974
        %v977 = vrot.slane %v976, 2
        %vm978 = vcmp.lt.s32.totalorder %v976, %v977
        %v979 = vsel %vm978, %v976, %v977
        %v980 = vrot.slane %v979, 1
        %vm981 = vcmp.lt.s32.totalorder %v979, %v980
        %v982 = vsel %vm981, %v979, %v980
        %vm983 = vcmp.lt.s32.totalorder %v913, %v917
        %v984 = vsel %vm983, %v913, %v917
        %vm985 = vcmp.lt.s32.totalorder %v915, %v919
        %v986 = vsel %vm985, %v915, %v919
        %vm987 = vcmp.lt.s32.totalorder %v984, %v921
        %v988 = vsel %vm987, %v984, %v921
        %vm989 = vcmp.lt.s32.totalorder %v986, %v923
        %v990 = vsel %vm989, %v986, %v923
        %vm991 = vcmp.lt.s32.totalorder %v988, %v925
        %v992 = vsel %vm991, %v988, %v925
        %vm993 = vcmp.lt.s32.totalorder %v990, %v927
        %v994 = vsel %vm993, %v990, %v927
        %vm995 = vcmp.lt.s32.totalorder %v992, %v929
        %v996 = vsel %vm995, %v992, %v929
        %vm997 = vcmp.lt.s32.totalorder %v994, %v931
        %v998 = vsel %vm997, %v994, %v931
        %vm999 = vcmp.lt.s32.totalorder %v996, %v933
        %v1000 = vsel %vm999, %v996, %v933
        %vm1001 = vcmp.lt.s32.totalorder %v998, %v935
        %v1002 = vsel %vm1001, %v998, %v935
        %vm1003 = vcmp.lt.s32.totalorder %v1000, %v937
        %v1004 = vsel %vm1003, %v1000, %v937
        %vm1005 = vcmp.lt.s32.totalorder %v1002, %v939
        %v1006 = vsel %vm1005, %v1002, %v939
        %vm1007 = vcmp.lt.s32.totalorder %v1004, %v941
        %v1008 = vsel %vm1007, %v1004, %v941
        %vm1009 = vcmp.lt.s32.totalorder %v1006, %v943
        %v1010 = vsel %vm1009, %v1006, %v943
        %vm1011 = vcmp.lt.s32.totalorder %v1008, %v1010
        %v1012 = vsel %vm1011, %v1008, %v1010
        %v1013 = vrot.slane %v1012, 4
        %vm1014 = vcmp.lt.s32.totalorder %v1012, %v1013
        %v1015 = vsel %vm1014, %v1012, %v1013
        %v1016 = vrot.slane %v1015, 2
        %vm1017 = vcmp.lt.s32.totalorder %v1015, %v1016
        %v1018 = vsel %vm1017, %v1015, %v1016
        %v1019 = vrot.slane %v1018, 1
        %vm1020 = vcmp.lt.s32.totalorder %v1018, %v1019
        %v1021 = vsel %vm1020, %v1018, %v1019
        %vm1022 = vcmp.ge.s32.totalorder %v982, 8
        %vm1023 = vcmp.ge.s32.totalorder %v1021, 8
        %v1024 = vsel %vm1022, 4294967295, %v982
        %v1025 = vsel %vm1023, 4294967295, %v1021
        %1026 = vst [vmem:[%s179] sm:$0xff] %v1024
        %1027 = vst [vmem:[%s179 + $0x8] sm:$0xff] %v1025
        %s1028 = sand.u32 %s94, 1
        %s1029 = scalar_lea.sflag [#allocation4], %s1028
        %s1030 = sand.u32 %s94, 1
        %s1031 = smul.addr %s1030, 16
        %s1032 = scalar_lea.vmem [#allocation5], %s1031
        // Predicated region
        $region37: #{tpu_custom_call.1} parent=31 // pred_check
          %p1033 = pneg %p104
        $region38: #{tpu_custom_call.1} parent=31 // pred_check_branch
          %1035 = sbr.rel (%p1033) target = $region40
        $region39: #{tpu_custom_call.1} parent=31 // pred_region
          %s1036 = smul.u32 2, %s18
          %s1038 = ssub.s32 256, 256
          %1039 = vsyncadd %s1029, %s1038
          %s1040 = smul.addr %s1036, 128
          %s1041 = scalar_lea.hbm %s3, %s1040
          %s1043 = sshll.u32 %s1032, 4
          %s1044 = int_to_ptr.vmem [resolvable:$true] %s1043
          %1046 = dma.vmem_to_hbm [thread:$0]  %s1044, 256, %s1041, %s1029
        $region40: #{tpu_custom_call.1} parent=31 // pred_fallthru
          _
      $region32: #{tpu_custom_call.1} parent=5 // pred_fallthru
        _
      %p1047 = scmp.le.s32.totalorder 2, %s13
      // Predicated region
      $region41: #{tpu_custom_call.1} parent=5 // pred_check
        %p1048 = pneg %p1047
      $region42: #{tpu_custom_call.1} parent=5 // pred_check_branch
        %1050 = sbr.rel (%p1048) target = $region44
      $region43: #{tpu_custom_call.1} parent=5 // pred_region
        %s1051 = ssub.s32 %s13, 2
        // Predicated region
        $region45: #{tpu_custom_call.1} parent=43 // pred_check
          %p1052 = pneg %p110
        $region46: #{tpu_custom_call.1} parent=43 // pred_check_branch
          %1054 = sbr.rel (%p1052) target = $region48
        $region47: #{tpu_custom_call.1} parent=43 // pred_region
          %s1055 = sand.u32 %s95, 1
          %s1056 = scalar_lea.sflag [#allocation4], %s1055
          %s1057 = sand.u32 %s95, 1
          %s1058 = smul.addr %s1057, 16
          %s1059 = scalar_lea.vmem [#allocation5], %s1058
          %1060 = dma.done %s1056, 256
        $region48: #{tpu_custom_call.1} parent=43 // pred_fallthru
          _
      $region44: #{tpu_custom_call.1} parent=5 // pred_fallthru
        _
    $region6: #{tpu_custom_call.1} parent=1 // loop_footer
      %s17 = sadd.s32 1, %s13
    $region7: #{tpu_custom_call.1} parent=1 // loop_footer_branch
      %12 = sbr.rel target = $region3
    $region8: #{tpu_custom_call.1} parent=1 // loop_exit
      _
    %1061 = vsyncpa [#allocation3], 1
    %s1062 = scalar_lea.sflag [#allocation3], 1
    %1063 = vsyncpa %s1062, 1
    %1064 = vsyncpa [#allocation4], 1
    %s1065 = scalar_lea.sflag [#allocation4], 1
    %1066 = vsyncpa %s1065, 1

</llo_original>
